<compile_context>
chip_gen: v5e
topology: v5e:2x2
jax: 0.10.0
libtpu: 0.0.40
codegen_flags: <defaults>
</compile_context>

<pallas_src>
import functools

import jax
import jax.numpy as jnp
from jax import lax
from jax.experimental import pallas as pl
from jax.experimental.pallas import tpu as pltpu


def _irm_penalty_kernel(y_ref, labels_ref, out_ref, *, n_rows, row_tile):
    """Per-tile partial sums of d(CE)/d(scale) row contributions, split by row parity.

    For one row y with label l:  g = sum_c softmax(y)_c * y_c - y_l
    which equals d/ds [ logsumexp(s*y) - s*y_l ] at s = 1.  The row max cancels
    algebraically, so everything is computed on the max-shifted logits.
    """
    i = pl.program_id(0)

    y = y_ref[...].astype(jnp.float32)                         # (TN, C)
    labels = labels_ref[...]                                   # (TN, 1) int32

    m = jnp.max(y, axis=-1, keepdims=True)                     # (TN, 1)
    shifted = y - m                                            # (TN, C)
    e = jnp.exp(shifted)                                       # (TN, C)
    denom = jnp.sum(e, axis=-1, keepdims=True)                 # (TN, 1)
    wsum = jnp.sum(e * shifted, axis=-1, keepdims=True)        # (TN, 1)

    # Label pick via VPU one-hot compare on the *shifted* logits (no gather, no 0*inf NaN).
    col_ids = lax.broadcasted_iota(jnp.int32, shifted.shape, 1)
    onehot = (col_ids == labels).astype(jnp.float32)
    picked = jnp.sum(onehot * shifted, axis=-1, keepdims=True)  # (TN, 1)

    g = wsum / denom - picked                                   # (TN, 1) per-row d(CE)/d(scale)

    # Mask rows past N (ragged last tile) and split by global row parity.
    row_ids = i * row_tile + lax.broadcasted_iota(jnp.int32, (row_tile, 1), 0)
    valid = row_ids < n_rows
    is_even = (row_ids % 2) == 0

    g_even = jnp.sum(jnp.where(valid & is_even, g, 0.0))
    g_odd = jnp.sum(jnp.where(valid & jnp.logical_not(is_even), g, 0.0))

    # Lane-dense (1, 8, 128) output block: lane 0 = even-row partial, lane 1 = odd-row partial.
    lane = lax.broadcasted_iota(jnp.int32, (1, 8, 128), 2)
    out_ref[...] = jnp.where(lane == 0, g_even, jnp.where(lane == 1, g_odd, 0.0))


def _choose_row_tile(n, c, itemsize, target_block_bytes=8 * 1024 * 1024):
    """Row tile: multiple of 8 sublanes, logits block <= ~8 MiB (v7x-safe with 2x buffering),
    capped at 1024 rows (enough to amortize the ~0.35 us per-grid-step overhead)."""
    if n <= 8:
        return n
    rows = target_block_bytes // max(1, c * itemsize)
    rows = int(max(8, min(rows, 1024, n)))
    return max(8, (rows // 8) * 8)


def invariance_penalty_loss(y, labels, *, row_tile=None):
    """IRM invariance penalty: grad_1 * grad_2 where grad_k = d/d(scale) CE(y_half_k*scale, l_half_k)
    at scale=1; halves are even-/odd-indexed rows (matches the PyTorch module's forward)."""
    n, c = y.shape
    if n < 2:
        raise ValueError("InvariancePenaltyLoss needs at least 2 rows (one per half)")
    labels2d = labels.astype(jnp.int32).reshape(n, 1)

    if row_tile is None:
        row_tile = _choose_row_tile(n, c, jnp.dtype(y.dtype).itemsize)
    grid = pl.cdiv(n, row_tile)

    kernel = functools.partial(_irm_penalty_kernel, n_rows=n, row_tile=row_tile)

    # TODO(synk): for vocab-scale C (>= ~8-32K classes), also tile the class axis with an
    # online max/denominator accumulator so each block stays (TN, TC) on v7x's 64 MiB VMEM.
    partial_sums = pl.pallas_call(
        kernel,
        out_shape=jax.ShapeDtypeStruct((grid, 8, 128), jnp.float32),
        grid=(grid,),
        in_specs=[
            # Logits stay in their native dtype (e.g. bf16) -> half the HBM bytes vs f32 upcast.
            pl.BlockSpec((row_tile, c), lambda i: (i, 0)),
            pl.BlockSpec((row_tile, 1), lambda i: (i, 0)),
        ],
        out_specs=pl.BlockSpec((1, 8, 128), lambda i: (i, 0, 0)),
        compiler_params=pltpu.CompilerParams(
            dimension_semantics=("parallel",),            # tiles independent -> megacore shardable
            vmem_limit_bytes=48 * 1024 * 1024,            # headroom, still < v7x 64 MiB physical
        ),
    )(y, labels2d)

    n_even = (n + 1) // 2
    n_odd = n // 2
    grad_1 = jnp.sum(partial_sums[:, 0, 0]) / jnp.float32(n_even)
    grad_2 = jnp.sum(partial_sums[:, 0, 1]) / jnp.float32(n_odd)
    return grad_1 * grad_2


def _reference_penalty(y, labels):
    """Pure-JAX mirror of the PyTorch module (autograd through the dummy scale at 1.0)."""
    y32 = y.astype(jnp.float32)
    labels = labels.astype(jnp.int32)

    def ce(logits, labs):
        logp = jax.nn.log_softmax(logits, axis=-1)
        return -jnp.mean(jnp.take_along_axis(logp, labs[:, None], axis=-1))

    def grad_wrt_scale(logits, labs):
        return jax.grad(lambda s: ce(logits * s, labs))(jnp.float32(1.0))

    g1 = grad_wrt_scale(y32[0::2], labels[0::2])
    g2 = grad_wrt_scale(y32[1::2], labels[1::2])
    return g1 * g2


if __name__ == "__main__":
    key = jax.random.PRNGKey(0)
    k1, k2, k3, k4 = jax.random.split(key, 4)

    # Small shapes consistent with the module: (N, C) logits + (N,) labels.
    N, C = 8, 32
    y = jax.random.normal(k1, (N, C), dtype=jnp.float32)
    labels = jax.random.randint(k2, (N,), 0, C, dtype=jnp.int32)

    out = invariance_penalty_loss(y, labels)
    jax.block_until_ready(out)
    ref = _reference_penalty(y, labels)
    assert jnp.allclose(out, ref, atol=1e-5, rtol=1e-4), (out, ref)

    # Exercise grid > 1, ragged last tile (N % tile != 0) and odd/even split masking.
    N2, C2 = 26, 128
    y2 = jax.random.normal(k3, (N2, C2), dtype=jnp.float32)
    labels2 = jax.random.randint(k4, (N2,), 0, C2, dtype=jnp.int32)
    out2 = invariance_penalty_loss(y2, labels2, row_tile=8)
    jax.block_until_ready(out2)
    ref2 = _reference_penalty(y2, labels2)
    assert jnp.allclose(out2, ref2, atol=1e-5, rtol=1e-4), (out2, ref2)

    print("KERNEL_OK")
</pallas_src>

<mosaic_0001>
module attributes {stable_mosaic.version = 11 : i64} {
  func.func @_irm_penalty_kernel(%arg0: i32, %arg1: memref<8x32xf32, #tpu.memory_space<vmem>>, %arg2: memref<8x1xi32, #tpu.memory_space<vmem>>, %arg3: memref<1x8x128xf32, #tpu.memory_space<vmem>>) attributes {dimension_semantics = [#tpu.dimension_semantics<parallel>], iteration_bounds = array<i64: 1>, scalar_prefetch = 0 : i64, scratch_operands = 0 : i64, tpu.core_type = #tpu.core_type<tc>, window_params = [{transform_indices = @transform_0, window_bounds = array<i64: 8, 32>}, {transform_indices = @transform_1, window_bounds = array<i64: 8, 1>}, {transform_indices = @transform_2, window_bounds = array<i64: 1, 8, 128>}]} {
    %c0 = arith.constant 0 : index
    %c0_0 = arith.constant 0 : index
    %0 = vector.load %arg1[%c0, %c0_0] : memref<8x32xf32, #tpu.memory_space<vmem>>, vector<8x32xf32>
    %c0_1 = arith.constant 0 : index
    %c0_2 = arith.constant 0 : index
    %1 = vector.load %arg2[%c0_1, %c0_2] : memref<8x1xi32, #tpu.memory_space<vmem>>, vector<8x1xi32>
    %cst = arith.constant dense<0xFF800000> : vector<8xf32>
    %2 = vector.multi_reduction <maximumf>, %0, %cst [1] : vector<8x32xf32> to vector<8xf32>
    %3 = vector.shape_cast %2 : vector<8xf32> to vector<8x1xf32>
    %4 = vector.broadcast %3 : vector<8x1xf32> to vector<8x32xf32>
    %5 = arith.subf %0, %4 : vector<8x32xf32>
    %6 = math.exp %5 : vector<8x32xf32>
    %cst_3 = arith.constant dense<0.000000e+00> : vector<8xf32>
    %7 = vector.multi_reduction <add>, %6, %cst_3 [1] : vector<8x32xf32> to vector<8xf32>
    %8 = vector.shape_cast %7 : vector<8xf32> to vector<8x1xf32>
    %9 = arith.mulf %6, %5 : vector<8x32xf32>
    %cst_4 = arith.constant dense<0.000000e+00> : vector<8xf32>
    %10 = vector.multi_reduction <add>, %9, %cst_4 [1] : vector<8x32xf32> to vector<8xf32>
    %11 = vector.shape_cast %10 : vector<8xf32> to vector<8x1xf32>
    %12 = tpu.iota {dimensions = array<i32: 1>} : vector<8x32xi32>
    %13 = vector.broadcast %1 : vector<8x1xi32> to vector<8x32xi32>
    %14 = arith.cmpi eq, %12, %13 : vector<8x32xi32>
    %15 = arith.extui %14 : vector<8x32xi1> to vector<8x32xi32>
    %16 = arith.sitofp %15 : vector<8x32xi32> to vector<8x32xf32>
    %17 = arith.mulf %16, %5 : vector<8x32xf32>
    %cst_5 = arith.constant dense<0.000000e+00> : vector<8xf32>
    %18 = vector.multi_reduction <add>, %17, %cst_5 [1] : vector<8x32xf32> to vector<8xf32>
    %19 = vector.shape_cast %18 : vector<8xf32> to vector<8x1xf32>
    %20 = arith.divf %11, %8 : vector<8x1xf32>
    %21 = arith.subf %20, %19 : vector<8x1xf32>
    %c8_i32 = arith.constant 8 : i32
    %22 = arith.muli %arg0, %c8_i32 : i32
    %23 = tpu.iota {dimensions = array<i32: 0>} : vector<8x1xi32>
    %24 = vector.broadcast %22 : i32 to vector<8x1xi32>
    %25 = arith.addi %24, %23 : vector<8x1xi32>
    %c8_i32_6 = arith.constant 8 : i32
    %26 = vector.broadcast %c8_i32_6 : i32 to vector<8x1xi32>
    %27 = arith.cmpi slt, %25, %26 : vector<8x1xi32>
    %c2_i32 = arith.constant 2 : i32
    %c0_i32 = arith.constant 0 : i32
    %28 = arith.cmpi eq, %c2_i32, %c0_i32 : i32
    %c1_i32 = arith.constant 1 : i32
    %29 = arith.select %28, %c1_i32, %c2_i32 : i32
    %30 = vector.broadcast %29 : i32 to vector<8x1xi32>
    %31 = arith.remsi %25, %30 : vector<8x1xi32>
    %c0_i32_7 = arith.constant 0 : i32
    %32 = vector.broadcast %c0_i32_7 : i32 to vector<8x1xi32>
    %33 = arith.cmpi ne, %31, %32 : vector<8x1xi32>
    %c0_i32_8 = arith.constant 0 : i32
    %34 = vector.broadcast %c0_i32_8 : i32 to vector<8x1xi32>
    %35 = arith.cmpi slt, %31, %34 : vector<8x1xi32>
    %c0_i32_9 = arith.constant 0 : i32
    %36 = arith.cmpi slt, %29, %c0_i32_9 : i32
    %37 = vector.broadcast %36 : i1 to vector<8x1xi1>
    %38 = vector.broadcast %37 : vector<8x1xi1> to vector<8x1xi1>
    %39 = arith.xori %35, %38 : vector<8x1xi1>
    %40 = arith.andi %39, %33 : vector<8x1xi1>
    %41 = vector.broadcast %29 : i32 to vector<8x1xi32>
    %42 = arith.addi %31, %41 : vector<8x1xi32>
    %43 = arith.select %40, %42, %31 : vector<8x1xi1>, vector<8x1xi32>
    %c0_i32_10 = arith.constant 0 : i32
    %44 = vector.broadcast %c0_i32_10 : i32 to vector<8x1xi32>
    %45 = arith.cmpi eq, %43, %44 : vector<8x1xi32>
    %46 = arith.andi %27, %45 : vector<8x1xi1>
    %cst_11 = arith.constant 0.000000e+00 : f32
    %47 = vector.broadcast %cst_11 : f32 to vector<8x1xf32>
    %48 = arith.select %46, %21, %47 : vector<8x1xi1>, vector<8x1xf32>
    %49 = vector.shape_cast %48 : vector<8x1xf32> to vector<1x8x1xf32>
    %cst_12 = arith.constant dense<0.000000e+00> : vector<1xf32>
    %50 = vector.multi_reduction <add>, %49, %cst_12 [1, 2] : vector<1x8x1xf32> to vector<1xf32>
    %51 = vector.shape_cast %50 : vector<1xf32> to vector<1x1x1xf32>
    %52 = vector.extract %51[0, 0, 0] : f32 from vector<1x1x1xf32>
    %cst_13 = arith.constant dense<true> : vector<8x1xi1>
    %53 = arith.xori %45, %cst_13 : vector<8x1xi1>
    %54 = arith.andi %27, %53 : vector<8x1xi1>
    %cst_14 = arith.constant 0.000000e+00 : f32
    %55 = vector.broadcast %cst_14 : f32 to vector<8x1xf32>
    %56 = arith.select %54, %21, %55 : vector<8x1xi1>, vector<8x1xf32>
    %57 = vector.shape_cast %56 : vector<8x1xf32> to vector<1x8x1xf32>
    %cst_15 = arith.constant dense<0.000000e+00> : vector<1xf32>
    %58 = vector.multi_reduction <add>, %57, %cst_15 [1, 2] : vector<1x8x1xf32> to vector<1xf32>
    %59 = vector.shape_cast %58 : vector<1xf32> to vector<1x1x1xf32>
    %60 = vector.extract %59[0, 0, 0] : f32 from vector<1x1x1xf32>
    %61 = tpu.iota {dimensions = array<i32: 2>} : vector<1x8x128xi32>
    %c0_i32_16 = arith.constant 0 : i32
    %62 = vector.broadcast %c0_i32_16 : i32 to vector<1x8x128xi32>
    %63 = arith.cmpi eq, %61, %62 : vector<1x8x128xi32>
    %c1_i32_17 = arith.constant 1 : i32
    %64 = vector.broadcast %c1_i32_17 : i32 to vector<1x8x128xi32>
    %65 = arith.cmpi eq, %61, %64 : vector<1x8x128xi32>
    %cst_18 = arith.constant 0.000000e+00 : f32
    %66 = vector.broadcast %60 : f32 to vector<1x8x128xf32>
    %67 = vector.broadcast %cst_18 : f32 to vector<1x8x128xf32>
    %68 = arith.select %65, %66, %67 : vector<1x8x128xi1>, vector<1x8x128xf32>
    %69 = vector.broadcast %52 : f32 to vector<1x8x128xf32>
    %70 = arith.select %63, %69, %68 : vector<1x8x128xi1>, vector<1x8x128xf32>
    %c0_19 = arith.constant 0 : index
    %c0_20 = arith.constant 0 : index
    %c0_21 = arith.constant 0 : index
    %71 = vector.load %arg3[%c0_19, %c0_20, %c0_21] : memref<1x8x128xf32, #tpu.memory_space<vmem>>, vector<1x8x128xf32>
    tpu.vector_store %arg3[%c0_19, %c0_20, %c0_21], %70 {strides = array<i32>} : memref<1x8x128xf32, #tpu.memory_space<vmem>>, vector<1x8x128xf32>,
    return
  }
  func.func @transform_0(%arg0: i32) -> (i32, i32) {
    %c0_i32 = arith.constant 0 : i32
    %c0_i32_0 = arith.constant 0 : i32
    return %arg0, %c0_i32 : i32, i32
  }
  func.func @transform_1(%arg0: i32) -> (i32, i32) {
    %c0_i32 = arith.constant 0 : i32
    %c0_i32_0 = arith.constant 0 : i32
    return %arg0, %c0_i32 : i32, i32
  }
  func.func @transform_2(%arg0: i32) -> (i32, i32, i32) {
    %c0_i32 = arith.constant 0 : i32
    %c0_i32_0 = arith.constant 0 : i32
    %c0_i32_1 = arith.constant 0 : i32
    return %arg0, %c0_i32, %c0_i32_0 : i32, i32, i32
  }
}

</mosaic_0001>

<llo_original>
// kernel: tpu_custom_call.1
$region0: #{tpu_custom_call.1}
  #allocation0 [shape = 'u32[]', space=smem, size = 0x4, offset = 0x4, fixed_abs, tag = 'smem constant byte address 0x4 - core index']
  #allocation1 [shape = 'u32[72,128]{1,0:T(1,128)}', space=vmem, size = 0x9000, scoped, tag = 'internal scratch']
  %s0 = inlined_call_operand.vmem [shape: f32[8,32], index: 0, kind: input, shape index: {}]
  %s1 = inlined_call_operand.vmem [shape: s32[8,1], index: 1, kind: input, shape index: {}]
  %s2 = inlined_call_operand.hbm [shape: f32[1,8,128], index: 2, kind: output, shape index: {}]
  %s3 = sld [smem:[#allocation0]]
  $region18: #{tpu_custom_call.1} parent=0
    _
  %s5 = ssub.s32 1, %s3
  %s6 = scalar_select 0, %s5, %s3
  $region1: #{tpu_custom_call.1} parent=0
    #allocation2 [shape = 'u8[4096]{0}', space=vmem, size = 0x1000, scoped, tag = 'output window, operand 0, single buffered']
    #allocation3 [shape = 's32[1]{0}', space=sflag, size = 0x4, scoped, tag = 'scoped memory for tpu_custom_call.1']
    %7 = vsyncpa [#allocation3], 0
    // Predicated region
    $region2: #{tpu_custom_call.1} parent=1 // pred_check
      _
    $region3: #{tpu_custom_call.1} parent=1 // pred_check_branch
      %9 = sbr.rel (0) target = $region5
    $region4: #{tpu_custom_call.1} parent=1 // pred_region
      _
    $region5: #{tpu_custom_call.1} parent=1 // pred_fallthru
      _
    // Predicated region
    $region6: #{tpu_custom_call.1} parent=1 // pred_check
      _
    $region7: #{tpu_custom_call.1} parent=1 // pred_check_branch
      %11 = sbr.rel (0) target = $region9
    $region8: #{tpu_custom_call.1} parent=1 // pred_region
      _
    $region9: #{tpu_custom_call.1} parent=1 // pred_fallthru
      _
    %v12 = vld [vmem:[%s0] sm:$0xff]
    %v13 = vld [vmem:[%s1] sm:$0xff]
    %vm14 = vcmask 261120
    %v15 = vsel %vm14, %v12, -inf
    %16 = vmax.xlane.f32.xlu0 %v15
    %v17 = vpop.xlane.xlu0 %16
    %v18 = vsub.f32 %v12, %v17
    %v19 = vmul.f32 %v18, 1.442695
    %v20 = vpow.pop %v19
    %v21 = vsel %vm14, %v20, 0.0
    %22 = vadd.xlane.f32.xlu0 %v21
    %v23 = vpop.xlane.xlu0 %22
    %v24 = vmul.f32 %v20, %v18
    %v25 = vsel %vm14, %v24, 0.0
    %26 = vadd.xlane.f32.xlu0 %v25
    %v27 = vpop.xlane.xlu0 %26
    %v28 = vlaneseq
    %v29 = vand.u32 %v28, 127
    %30 = vset.pattern.permute.xlu0 0
    %31 = vperm.xlu0 %30, %v13
    %v32 = vpop.permute.xlu0 %31
    %vm33 = vcmp.eq.s32.totalorder %v29, %v32
    %v34 = vsel %vm33, 1, 0
    %v35 = vcvt.s32.f32 %v34
    %v36 = vmul.f32 %v35, %v18
    %v37 = vsel %vm14, %v36, 0.0
    %38 = vadd.xlane.f32.xlu0 %v37
    %v39 = vpop.xlane.xlu0 %38
    %v40 = vrcp.pop %v23
    %v41 = vmul.f32 %v23, %v40
    %v42 = vsub.f32 1.0, %v41
    %v43 = vmul.f32 %v40, %v42
    %v44 = vadd.f32 %v40, %v43
    %vm45 = vweird.f32 %v23
    %vm46 = vweird.f32 %v40
    %vm47 = vmor %vm45, %vm46
    %v48 = vsel %vm47, %v40, %v44
    %v49 = vand.u32 2147483647, %v23
    %vm50 = vcmp.eq.f32.partialorder %v49, 8.507059e+37
    %v51 = vand.u32 %v23, 2147483648
    %v52 = vor.u32 1.1754944e-38, %v51
    %v53 = vsel %vm50, %v52, %v48
    %v54 = vmul.f32 %v27, %v53
    %v55 = vsub.f32 %v54, %v39
    %s56 = smul.u32 0, 8
    %v57 = vlaneseq
    %v58 = vshrl.u32 %v57, 7
    %v59 = vstv %s56
    %v60 = vadd.s32 %v59, %v58
    %vm61 = vcmp.lt.s32.totalorder %v60, 8
    %vm62 = vcmp.lt.s32.totalorder %v60, 0
    %v63 = vsub.s32 0, %v60
    %v64 = vsel %vm62, %v63, %v60
    %v65 = vshrl.u32 %v64, 1
    %v66 = vand.u32 %v64, 1
    %v67 = vsub.s32 0, %v66
    %v68 = vsel %vm62, %v67, %v66
    %vm69 = vcmp.ne.s32.totalorder %v68, 0
    %vm70 = vcmp.lt.s32.totalorder %v68, 0
    %vm71 = vmand %vm70, %vm69
    %v72 = vadd.s32 %v68, 2
    %v73 = vsel %vm71, %v72, %v68
    %vm74 = vcmp.eq.s32.totalorder %v73, 0
    %vm75 = vmand %vm61, %vm74
    %v76 = vsel %vm75, %v55, 0.0
    %vm77 = vcmask 7168
    %v78 = vsel %vm77, %v76, 0.0
    %79 = vadd.xlane.f32.xlu0 %v78
    %v80 = vpop.xlane.xlu0 %79
    %v81 = vrot.slane %v80, 4
    %v82 = vadd.f32 %v80, %v81
    %v83 = vrot.slane %v82, 2
    %v84 = vadd.f32 %v82, %v83
    %v85 = vrot.slane %v84, 1
    %v86 = vadd.f32 %v84, %v85
    %s87 = vtos %v86
    %vm88 = vmxor %vm74, 1
    %vm89 = vmand %vm61, %vm88
    %v90 = vsel %vm89, %v55, 0.0
    %v91 = vsel %vm77, %v90, 0.0
    %92 = vadd.xlane.f32.xlu0 %v91
    %v93 = vpop.xlane.xlu0 %92
    %v94 = vrot.slane %v93, 4
    %v95 = vadd.f32 %v93, %v94
    %v96 = vrot.slane %v95, 2
    %v97 = vadd.f32 %v95, %v96
    %v98 = vrot.slane %v97, 1
    %v99 = vadd.f32 %v97, %v98
    %s100 = vtos %v99
    %vm101 = vcmp.eq.s32.totalorder %v29, 0
    %vm102 = vcmp.eq.s32.totalorder %v29, 1
    %v103 = vstv %s100
    %v104 = vsel %vm102, %v103, 0.0
    %v105 = vstv %s87
    %v106 = vsel %vm101, %v105, %v104
    %107 = vst [vmem:[#allocation2] sm:$0xff] %v106
    // Predicated region
    $region10: #{tpu_custom_call.1} parent=1 // pred_check
      _
    $region11: #{tpu_custom_call.1} parent=1 // pred_check_branch
      %109 = sbr.rel (0) target = $region13
    $region12: #{tpu_custom_call.1} parent=1 // pred_region
      %111 = vsyncadd [#allocation3], 0
      %s113 = sshll.u32 [#allocation2], 4
      %s114 = int_to_ptr.vmem [resolvable:$true] %s113
      %s115 = sshll.u32 %s2, 4
      %s116 = int_to_ptr.hbm [resolvable:$true] %s115
      %118 = dma.vmem_to_hbm [thread:$0]  %s114, 128, %s116, [#allocation3]
    $region13: #{tpu_custom_call.1} parent=1 // pred_fallthru
      _
    // Predicated region
    $region14: #{tpu_custom_call.1} parent=1 // pred_check
      _
    $region15: #{tpu_custom_call.1} parent=1 // pred_check_branch
      %120 = sbr.rel (0) target = $region17
    $region16: #{tpu_custom_call.1} parent=1 // pred_region
      %122 = dma.done [#allocation3], 128
    $region17: #{tpu_custom_call.1} parent=1 // pred_fallthru
      _
    %123 = vsyncpa [#allocation3], 1

</llo_original>
